<compile_context>
chip_gen: v7x
topology: tpu7x:2x2x1
jax: 0.10.0
libtpu: 0.0.40
codegen_flags: <defaults>
</compile_context>

<pallas_src>
import jax
import jax.numpy as jnp
from jax.experimental import pallas as pl
from jax.experimental.pallas import tpu as pltpu


# ----------------------------------------------------------------------------- kernels

def _scse_fused_kernel(x_ref, w1t_ref, b1_ref, w2_ref, b2_ref, ws_ref, bs_ref, o_ref):
    """Whole-image block: (1, C, HW). Computes cSE + sSE in one pass."""
    x = x_ref[0].astype(jnp.float32)                                   # (C, HW)
    _, hw = x.shape
    inv_hw = 1.0 / float(hw)

    # ---- cSE: global average pool -> FC -> ReLU -> FC -> sigmoid ----
    pooled = jnp.sum(x, axis=1, keepdims=True) * inv_hw                # (C, 1)
    h = jnp.sum(pooled * w1t_ref[...], axis=0, keepdims=True) + b1_ref[...]   # (1, Cr)
    h = jnp.maximum(h, 0.0)
    cse_logit = jnp.sum(w2_ref[...] * h, axis=1, keepdims=True) + b2_ref[...]  # (C, 1)
    cse = 1.0 / (1.0 + jnp.exp(-cse_logit))                            # (C, 1)

    # ---- sSE: per-pixel 1x1 conv over channels -> sigmoid ----
    sse_logit = jnp.sum(ws_ref[...] * x, axis=0, keepdims=True) + bs_ref[0]    # (1, HW)
    sse = 1.0 / (1.0 + jnp.exp(-sse_logit))                            # (1, HW)

    # x*cSE + x*sSE == x*(cSE + sSE): one broadcast add + one multiply per element.
    o_ref[0] = (x * (cse + sse)).astype(o_ref.dtype)


def _scse_stream_kernel(x_ref, cse_ref, ws_ref, bs_ref, o_ref):
    """HW-tiled block: (1, C, THW). cSE gate precomputed (hoisted) per (n, c)."""
    x = x_ref[0].astype(jnp.float32)                                   # (C, THW)
    cse = cse_ref[0]                                                   # (C, 1) f32 gate

    sse_logit = jnp.sum(ws_ref[...] * x, axis=0, keepdims=True) + bs_ref[0]    # (1, THW)
    sse = 1.0 / (1.0 + jnp.exp(-sse_logit))                            # (1, THW)

    o_ref[0] = (x * (cse + sse)).astype(o_ref.dtype)


# ----------------------------------------------------------------------------- wrapper

# Whole-image fused path only when the f32 image fits comfortably in every chip's
# default scoped VMEM (v5e 16 MiB) including double buffering and f32 temporaries.
_FUSED_MAX_IMAGE_F32_BYTES = 2 * 1024 * 1024
_VMEM_LIMIT_BYTES = 32 * 1024 * 1024   # safe on v5e/v6e/v7x (<= physical on all)


def _pick_hw_tile(hw, c):
    """Largest lane tile (multiple of 128, or full HW) whose double-buffered in+out f32
    footprint stays well under the smallest default scoped-VMEM budget."""
    per_buf_budget = int(2.5 * 1024 * 1024)          # bytes per (C, THW) f32 buffer
    max_thw = max(128, per_buf_budget // (c * 4))
    if hw <= max_thw:
        return hw
    return max(128, (max_thw // 128) * 128)


def scse_pallas(x_nchw, w1, b1, w2, b2, ws, bs, *, hw_tile=None, force_stream=False):
    """x_nchw: (N, C, H, W) any float dtype (preserved on output).
    w1: (Cr, C)  b1: (Cr,)   -- first 1x1 conv
    w2: (C, Cr)  b2: (C,)    -- second 1x1 conv
    ws: (C,)     bs: scalar  -- sSE 1x1 conv
    """
    N, C, H, W = x_nchw.shape
    Cr = w1.shape[0]
    HW = H * W
    dtype = x_nchw.dtype
    x = x_nchw.reshape(N, C, HW)                     # keep input dtype: no extra HBM pass

    w1f = jnp.asarray(w1, jnp.float32)               # (Cr, C)
    b1f = jnp.asarray(b1, jnp.float32)               # (Cr,)
    w2f = jnp.asarray(w2, jnp.float32)               # (C, Cr)
    b2f = jnp.asarray(b2, jnp.float32)               # (C,)
    wsc = jnp.asarray(ws, jnp.float32).reshape(C, 1)
    bs1 = jnp.asarray(bs, jnp.float32).reshape(1,)   # scalar -> SMEM

    fused_ok = (not force_stream) and (C * HW * 4 <= _FUSED_MAX_IMAGE_F32_BYTES)

    if fused_ok:
        # ---- single-pass fused path: 1 read + 1 write of x ----
        full = lambda shape: pl.BlockSpec(shape, lambda n, _s=shape: tuple(0 for _ in _s))
        out = pl.pallas_call(
            _scse_fused_kernel,
            out_shape=jax.ShapeDtypeStruct((N, C, HW), dtype),
            grid=(N,),
            in_specs=[
                pl.BlockSpec((1, C, HW), lambda n: (n, 0, 0)),        # x image
                full((C, Cr)),                                        # w1^T
                full((1, Cr)),                                        # b1
                full((C, Cr)),                                        # w2
                full((C, 1)),                                         # b2
                full((C, 1)),                                         # ws
                pl.BlockSpec(memory_space=pltpu.MemorySpace.SMEM),    # bs scalar
            ],
            out_specs=pl.BlockSpec((1, C, HW), lambda n: (n, 0, 0)),
            compiler_params=pltpu.CompilerParams(
                dimension_semantics=("parallel",),
                vmem_limit_bytes=_VMEM_LIMIT_BYTES),
        )(x, w1f.T.reshape(C, Cr), b1f.reshape(1, Cr), w2f.reshape(C, Cr),
          b2f.reshape(C, 1), wsc, bs1)
        return out.reshape(N, C, H, W)

    # ---- streaming path: hoist the tiny cSE gate, tile HW in the kernel ----
    # Pooling is one roofline read of x in XLA; the FCs are O(N*C) and free.
    pooled = jnp.mean(x, axis=2, dtype=jnp.float32)                   # (N, C)
    hcse = jnp.maximum(pooled @ w1f.T + b1f, 0.0)                     # (N, Cr)
    cse = jax.nn.sigmoid(hcse @ w2f.T + b2f).reshape(N, C, 1)         # (N, C, 1) f32

    thw = hw_tile if hw_tile is not None else _pick_hw_tile(HW, C)
    n_hw_tiles = pl.cdiv(HW, thw)

    out = pl.pallas_call(
        _scse_stream_kernel,
        out_shape=jax.ShapeDtypeStruct((N, C, HW), dtype),
        grid=(N, n_hw_tiles),
        in_specs=[
            pl.BlockSpec((1, C, thw), lambda n, t: (n, 0, t)),        # x tile
            pl.BlockSpec((1, C, 1), lambda n, t: (n, 0, 0)),          # cSE gate
            pl.BlockSpec((C, 1), lambda n, t: (0, 0)),                # ws
            pl.BlockSpec(memory_space=pltpu.MemorySpace.SMEM),        # bs scalar
        ],
        out_specs=pl.BlockSpec((1, C, thw), lambda n, t: (n, 0, t)),
        compiler_params=pltpu.CompilerParams(
            dimension_semantics=("parallel", "parallel"),
            vmem_limit_bytes=_VMEM_LIMIT_BYTES),
    )(x, cse, wsc, bs1)
    return out.reshape(N, C, H, W)


# ----------------------------------------------------------------------------- reference

def scse_reference(x, w1, b1, w2, b2, ws, bs):
    """Pure-JAX reference mirroring the PyTorch module (NCHW, f32 math)."""
    xf = x.astype(jnp.float32)
    pooled = jnp.mean(xf, axis=(2, 3))                                 # (N, C)
    h = jnp.maximum(pooled @ w1.T + b1, 0.0)                           # (N, Cr)
    cse = jax.nn.sigmoid(h @ w2.T + b2)[:, :, None, None]              # (N, C, 1, 1)
    sse = jax.nn.sigmoid(jnp.einsum("nchw,c->nhw", xf, ws) + bs)[:, None, :, :]
    return xf * cse + xf * sse


# ----------------------------------------------------------------------------- test

if __name__ == "__main__":
    key = jax.random.PRNGKey(0)
    reduction = 4

    # ---- Test 1: small shape -> fused single-pass path ----
    N, C, H, W = 2, 4, 16, 16
    Cr = C // reduction
    k = jax.random.split(key, 14)
    x = jax.random.normal(k[0], (N, C, H, W), jnp.float32)
    w1 = jax.random.normal(k[1], (Cr, C), jnp.float32) * 0.5
    b1 = jax.random.normal(k[2], (Cr,), jnp.float32) * 0.1
    w2 = jax.random.normal(k[3], (C, Cr), jnp.float32) * 0.5
    b2 = jax.random.normal(k[4], (C,), jnp.float32) * 0.1
    ws = jax.random.normal(k[5], (C,), jnp.float32) * 0.5
    bs = jax.random.normal(k[6], (), jnp.float32) * 0.1

    out = jax.block_until_ready(scse_pallas(x, w1, b1, w2, b2, ws, bs))
    ref = scse_reference(x, w1, b1, w2, b2, ws, bs)
    assert out.shape == (N, C, H, W) and out.dtype == x.dtype
    assert jnp.allclose(out, ref, atol=1e-5, rtol=1e-5), "fused path mismatch"

    # ---- Test 2: force the hoisted-cSE streaming path (HW tiled, grid=(N, tiles)) ----
    N2, C2, H2, W2 = 2, 8, 32, 32
    Cr2 = C2 // reduction
    x2 = jax.random.normal(k[7], (N2, C2, H2, W2), jnp.float32)
    w1b = jax.random.normal(k[8], (Cr2, C2), jnp.float32) * 0.5
    b1b = jax.random.normal(k[9], (Cr2,), jnp.float32) * 0.1
    w2b = jax.random.normal(k[10], (C2, Cr2), jnp.float32) * 0.5
    b2b = jax.random.normal(k[11], (C2,), jnp.float32) * 0.1
    wsb = jax.random.normal(k[12], (C2,), jnp.float32) * 0.5
    bsb = jax.random.normal(k[13], (), jnp.float32) * 0.1

    out2 = jax.block_until_ready(
        scse_pallas(x2, w1b, b1b, w2b, b2b, wsb, bsb, hw_tile=256, force_stream=True))
    ref2 = scse_reference(x2, w1b, b1b, w2b, b2b, wsb, bsb)
    assert out2.shape == (N2, C2, H2, W2) and out2.dtype == x2.dtype
    assert jnp.allclose(out2, ref2, atol=1e-5, rtol=1e-5), "streaming path mismatch"

    # ---- Test 3: bf16 input stays bf16 through the streaming path (dtype preserved) ----
    x2_bf16 = x2.astype(jnp.bfloat16)
    out3 = jax.block_until_ready(
        scse_pallas(x2_bf16, w1b, b1b, w2b, b2b, wsb, bsb, hw_tile=256, force_stream=True))
    ref3 = scse_reference(x2_bf16.astype(jnp.float32), w1b, b1b, w2b, b2b, wsb, bsb)
    assert out3.dtype == jnp.bfloat16
    assert jnp.allclose(out3.astype(jnp.float32), ref3, atol=5e-2, rtol=2e-2), "bf16 mismatch"

    print("KERNEL_OK")
</pallas_src>

<mosaic_0001>
module attributes {stable_mosaic.version = 11 : i64} {
  func.func @_scse_fused_kernel(%arg0: i32, %arg1: memref<1x4x256xf32, #tpu.memory_space<vmem>>, %arg2: memref<4x1xf32, #tpu.memory_space<vmem>>, %arg3: memref<1x1xf32, #tpu.memory_space<vmem>>, %arg4: memref<4x1xf32, #tpu.memory_space<vmem>>, %arg5: memref<4x1xf32, #tpu.memory_space<vmem>>, %arg6: memref<4x1xf32, #tpu.memory_space<vmem>>, %arg7: memref<1xf32, #tpu.memory_space<smem>>, %arg8: memref<1x4x256xf32, #tpu.memory_space<vmem>>) attributes {dimension_semantics = [#tpu.dimension_semantics<parallel>], iteration_bounds = array<i64: 2>, scalar_prefetch = 0 : i64, scratch_operands = 0 : i64, tpu.core_type = #tpu.core_type<tc>, window_params = [{transform_indices = @transform_0, window_bounds = array<i64: 1, 4, 256>}, {pipeline_mode = #tpu.pipeline_mode<synchronous>, transform_indices = @transform_1, window_bounds = array<i64: 4, 1>}, {pipeline_mode = #tpu.pipeline_mode<synchronous>, transform_indices = @transform_2, window_bounds = array<i64: 1, 1>}, {pipeline_mode = #tpu.pipeline_mode<synchronous>, transform_indices = @transform_3, window_bounds = array<i64: 4, 1>}, {pipeline_mode = #tpu.pipeline_mode<synchronous>, transform_indices = @transform_4, window_bounds = array<i64: 4, 1>}, {pipeline_mode = #tpu.pipeline_mode<synchronous>, transform_indices = @transform_5, window_bounds = array<i64: 4, 1>}, {transform_indices = @transform_6, window_bounds = array<i64: 1>}, {transform_indices = @transform_7, window_bounds = array<i64: 1, 4, 256>}]} {
    %c0 = arith.constant 0 : index
    %c0_0 = arith.constant 0 : index
    %c0_1 = arith.constant 0 : index
    %0 = vector.load %arg1[%c0, %c0_0, %c0_1] : memref<1x4x256xf32, #tpu.memory_space<vmem>>, vector<1x4x256xf32>
    %1 = vector.shape_cast %0 : vector<1x4x256xf32> to vector<4x256xf32>
    %cst = arith.constant dense<0.000000e+00> : vector<4xf32>
    %2 = vector.multi_reduction <add>, %1, %cst [1] : vector<4x256xf32> to vector<4xf32>
    %3 = vector.shape_cast %2 : vector<4xf32> to vector<4x1xf32>
    %cst_2 = arith.constant 3.906250e-03 : f32
    %4 = vector.broadcast %cst_2 : f32 to vector<4x1xf32>
    %5 = arith.mulf %3, %4 : vector<4x1xf32>
    %c0_3 = arith.constant 0 : index
    %c0_4 = arith.constant 0 : index
    %6 = vector.load %arg2[%c0_3, %c0_4] : memref<4x1xf32, #tpu.memory_space<vmem>>, vector<4x1xf32>
    %7 = arith.mulf %5, %6 : vector<4x1xf32>
    %cst_5 = arith.constant dense<0.000000e+00> : vector<1xf32>
    %8 = vector.multi_reduction <add>, %7, %cst_5 [0] : vector<4x1xf32> to vector<1xf32>
    %9 = vector.shape_cast %8 : vector<1xf32> to vector<1x1xf32>
    %c0_6 = arith.constant 0 : index
    %c0_7 = arith.constant 0 : index
    %10 = vector.load %arg3[%c0_6, %c0_7] : memref<1x1xf32, #tpu.memory_space<vmem>>, vector<1x1xf32>
    %11 = arith.addf %9, %10 : vector<1x1xf32>
    %cst_8 = arith.constant 0.000000e+00 : f32
    %12 = vector.broadcast %cst_8 : f32 to vector<1x1xf32>
    %13 = arith.maximumf %11, %12 : vector<1x1xf32>
    %c0_9 = arith.constant 0 : index
    %c0_10 = arith.constant 0 : index
    %14 = vector.load %arg4[%c0_9, %c0_10] : memref<4x1xf32, #tpu.memory_space<vmem>>, vector<4x1xf32>
    %15 = vector.broadcast %13 : vector<1x1xf32> to vector<4x1xf32>
    %16 = arith.mulf %14, %15 : vector<4x1xf32>
    %cst_11 = arith.constant dense<0.000000e+00> : vector<4xf32>
    %17 = vector.multi_reduction <add>, %16, %cst_11 [1] : vector<4x1xf32> to vector<4xf32>
    %18 = vector.shape_cast %17 : vector<4xf32> to vector<4x1xf32>
    %c0_12 = arith.constant 0 : index
    %c0_13 = arith.constant 0 : index
    %19 = vector.load %arg5[%c0_12, %c0_13] : memref<4x1xf32, #tpu.memory_space<vmem>>, vector<4x1xf32>
    %20 = arith.addf %18, %19 : vector<4x1xf32>
    %cst_14 = arith.constant 0.000000e+00 : f32
    %21 = vector.broadcast %cst_14 : f32 to vector<4x1xf32>
    %22 = arith.subf %21, %20 : vector<4x1xf32>
    %23 = math.exp %22 : vector<4x1xf32>
    %cst_15 = arith.constant 1.000000e+00 : f32
    %24 = vector.broadcast %cst_15 : f32 to vector<4x1xf32>
    %25 = arith.addf %24, %23 : vector<4x1xf32>
    %cst_16 = arith.constant 1.000000e+00 : f32
    %26 = vector.broadcast %cst_16 : f32 to vector<4x1xf32>
    %27 = arith.divf %26, %25 : vector<4x1xf32>
    %c0_17 = arith.constant 0 : index
    %c0_18 = arith.constant 0 : index
    %28 = vector.load %arg6[%c0_17, %c0_18] : memref<4x1xf32, #tpu.memory_space<vmem>>, vector<4x1xf32>
    %29 = vector.broadcast %28 : vector<4x1xf32> to vector<4x256xf32>
    %30 = arith.mulf %29, %1 : vector<4x256xf32>
    %cst_19 = arith.constant dense<0.000000e+00> : vector<256xf32>
    %31 = vector.multi_reduction <add>, %30, %cst_19 [0] : vector<4x256xf32> to vector<256xf32>
    %32 = vector.shape_cast %31 : vector<256xf32> to vector<1x256xf32>
    %c0_20 = arith.constant 0 : index
    %33 = memref.load %arg7[%c0_20] : memref<1xf32, #tpu.memory_space<smem>>
    %34 = vector.broadcast %33 : f32 to vector<1x256xf32>
    %35 = arith.addf %32, %34 : vector<1x256xf32>
    %cst_21 = arith.constant 0.000000e+00 : f32
    %36 = vector.broadcast %cst_21 : f32 to vector<1x256xf32>
    %37 = arith.subf %36, %35 : vector<1x256xf32>
    %38 = math.exp %37 : vector<1x256xf32>
    %cst_22 = arith.constant 1.000000e+00 : f32
    %39 = vector.broadcast %cst_22 : f32 to vector<1x256xf32>
    %40 = arith.addf %39, %38 : vector<1x256xf32>
    %cst_23 = arith.constant 1.000000e+00 : f32
    %41 = vector.broadcast %cst_23 : f32 to vector<1x256xf32>
    %42 = arith.divf %41, %40 : vector<1x256xf32>
    %43 = vector.broadcast %27 : vector<4x1xf32> to vector<4x256xf32>
    %44 = vector.broadcast %42 : vector<1x256xf32> to vector<4x256xf32>
    %45 = arith.addf %43, %44 : vector<4x256xf32>
    %46 = arith.mulf %1, %45 : vector<4x256xf32>
    %c0_24 = arith.constant 0 : index
    %c0_25 = arith.constant 0 : index
    %c0_26 = arith.constant 0 : index
    %47 = vector.load %arg8[%c0_24, %c0_25, %c0_26] : memref<1x4x256xf32, #tpu.memory_space<vmem>>, vector<1x4x256xf32>
    %48 = vector.shape_cast %47 : vector<1x4x256xf32> to vector<4x256xf32>
    %49 = vector.shape_cast %46 : vector<4x256xf32> to vector<1x4x256xf32>
    tpu.vector_store %arg8[%c0_24, %c0_25, %c0_26], %49 {strides = array<i32>} : memref<1x4x256xf32, #tpu.memory_space<vmem>>, vector<1x4x256xf32>,
    return
  }
  func.func @transform_0(%arg0: i32) -> (i32, i32, i32) {
    %c0_i32 = arith.constant 0 : i32
    %c0_i32_0 = arith.constant 0 : i32
    %c0_i32_1 = arith.constant 0 : i32
    return %arg0, %c0_i32, %c0_i32_0 : i32, i32, i32
  }
  func.func @transform_1(%arg0: i32) -> (i32, i32) {
    %c0_i32 = arith.constant 0 : i32
    %c0_i32_0 = arith.constant 0 : i32
    %c0_i32_1 = arith.constant 0 : i32
    return %c0_i32, %c0_i32_0 : i32, i32
  }
  func.func @transform_2(%arg0: i32) -> (i32, i32) {
    %c0_i32 = arith.constant 0 : i32
    %c0_i32_0 = arith.constant 0 : i32
    %c0_i32_1 = arith.constant 0 : i32
    return %c0_i32, %c0_i32_0 : i32, i32
  }
  func.func @transform_3(%arg0: i32) -> (i32, i32) {
    %c0_i32 = arith.constant 0 : i32
    %c0_i32_0 = arith.constant 0 : i32
    %c0_i32_1 = arith.constant 0 : i32
    return %c0_i32, %c0_i32_0 : i32, i32
  }
  func.func @transform_4(%arg0: i32) -> (i32, i32) {
    %c0_i32 = arith.constant 0 : i32
    %c0_i32_0 = arith.constant 0 : i32
    %c0_i32_1 = arith.constant 0 : i32
    return %c0_i32, %c0_i32_0 : i32, i32
  }
  func.func @transform_5(%arg0: i32) -> (i32, i32) {
    %c0_i32 = arith.constant 0 : i32
    %c0_i32_0 = arith.constant 0 : i32
    %c0_i32_1 = arith.constant 0 : i32
    return %c0_i32, %c0_i32_0 : i32, i32
  }
  func.func @transform_6(%arg0: i32) -> i32 {
    %c0_i32 = arith.constant 0 : i32
    %c0_i32_0 = arith.constant 0 : i32
    return %c0_i32 : i32
  }
  func.func @transform_7(%arg0: i32) -> (i32, i32, i32) {
    %c0_i32 = arith.constant 0 : i32
    %c0_i32_0 = arith.constant 0 : i32
    %c0_i32_1 = arith.constant 0 : i32
    return %arg0, %c0_i32, %c0_i32_0 : i32, i32, i32
  }
}

</mosaic_0001>

<llo_original>
// kernel: tpu_custom_call.1
$region0: #{tpu_custom_call.1}
  #allocation0 [shape = 'u32[]', space=smem, size = 0x4, offset = 0x4, fixed_abs, tag = 'smem constant byte address 0x4 - core index']
  #allocation1 [shape = 'u32[144,128]{1,0:T(1,128)}', space=vmem, size = 0x12000, scoped, tag = 'internal scratch']
  #allocation2 [shape = 'f32[1,1]{1,0:T(1,128)S(1)}', space=vmem, size = 0x200, scoped, tag = 'scoped memory for tpu_custom_call.1']
  #allocation3 [shape = 'f32[1]{0:T(128)S(6)}', space=smem, size = 0x200, scoped, tag = 'scoped memory for tpu_custom_call.1']
  %s0 = inlined_call_operand.vmem [shape: f32[2,4,256], index: 0, kind: input, shape index: {}]
  %s1 = inlined_call_operand.vmem [shape: f32[4,1], index: 1, kind: input, shape index: {}]
  %s2 = inlined_call_operand.<no memory space> [shape: f32[1,1], index: 2, kind: input, shape index: {}]
  %s3 = inlined_call_operand.vmem [shape: f32[4,1], index: 3, kind: input, shape index: {}]
  %s4 = inlined_call_operand.vmem [shape: f32[4,1], index: 4, kind: input, shape index: {}]
  %s5 = inlined_call_operand.vmem [shape: f32[4,1], index: 5, kind: input, shape index: {}]
  %s6 = inlined_call_operand.<no memory space> [shape: f32[1], index: 6, kind: input, shape index: {}]
  %s7 = inlined_call_operand.hbm [shape: f32[2,4,256], index: 7, kind: output, shape index: {}]
  %s8 = sld [smem:[#allocation0]]
  $region61: #{tpu_custom_call.1} parent=0
    _
  %s10 = ssub.s32 1, %s8
  %s11 = scalar_select 0, %s10, %s8
  %v12 = vstv %s2
  %13 = vst [vmem:[#allocation2] sm:$0x1] %v12
  %14 = sst [smem:[#allocation3]] %s6
  $region1: #{tpu_custom_call.1} parent=0
    #allocation4 [shape = 'u8[8192]{0}', space=vmem, size = 0x2000, scoped, tag = 'output window, operand 0']
    #allocation5 [shape = 's32[2]{0}', space=sflag, size = 0x8, scoped, tag = 'scoped memory for tpu_custom_call.1']
    %15 = vsyncpa [#allocation5], 0
    %s16 = scalar_lea.sflag [#allocation5], 1
    %17 = vsyncpa %s16, 0
    loop: start=0, step=1, limit=4
    $region2: #{tpu_custom_call.1} parent=1 // loop_pre_header
      _
    $region3: #{tpu_custom_call.1} parent=1 // loop_header
      %s19 = sphi 0, %s23
      %p20 = scmp.ge.s32.totalorder %s19, 4
      %s29 = sphi 0, %s31
      %s32 = sphi 0, %s29
      %s33 = sphi 0, %s32
      %s49 = sphi 0, %s33
      %s53 = sphi 0, %s53
      %s55 = sphi 0, %s53
      %s56 = sphi 0, %s55
      %s70 = sphi 0, %s56
      %s74 = sphi 0, %s74
      %s76 = sphi 0, %s74
      %s77 = sphi 0, %s76
      %s91 = sphi 0, %s77
      %s95 = sphi 0, %s95
      %s97 = sphi 0, %s95
      %s98 = sphi 0, %s97
      %s112 = sphi 0, %s98
      %s116 = sphi 0, %s116
      %s118 = sphi 0, %s116
      %s119 = sphi 0, %s118
      %s133 = sphi 0, %s119
      %s137 = sphi 0, %s137
      %s139 = sphi 0, %s137
      %s140 = sphi 0, %s139
      %s154 = sphi 0, %s140
      %s158 = sphi 0, %s158
      %s160 = sphi 0, %s158
      %s161 = sphi 0, %s160
      %s175 = sphi 0, %s161
      %s181 = sphi 0, %s183
      %s184 = sphi 0, %s181
      %s185 = sphi 0, %s184
      %s201 = sphi 0, %s185
    $region4: #{tpu_custom_call.1} parent=1 // loop_header_branch
      %22 = sbr.rel (%p20) target = $region8
    $region5: #{tpu_custom_call.1} parent=1 // loop_body
      %s24 = ssub.s32 %s19, 1
      %s25 = ssub.s32 %s19, 2
      %s26 = sadd.s32 %s19, 1
      %s27 = ssub.s32 %s19, %s26
      %p28 = scmp.eq.s32.totalorder %s27, 0
      %s30 = sadd.s32 %s29, 1
      %s31 = scalar_select %p28, %s29, %s30
      %p34 = pneg %p28
      %p35 = scmp.eq.s32.totalorder %s19, 1
      %p36 = por %p34, %p35
      %p37 = scmp.ne.s32.totalorder %s29, %s32
      %p38 = scmp.eq.s32.totalorder %s19, 0
      %p39 = por %p37, %p38
      %p40 = scmp.ne.s32.totalorder %s29, %s32
      %p41 = scmp.eq.s32.totalorder %s24, 1
      %p42 = por %p40, %p41
      %p43 = scmp.ne.s32.totalorder %s32, %s33
      %p44 = scmp.eq.s32.totalorder %s24, 0
      %p45 = por %p43, %p44
      %p46 = scmp.ne.s32.totalorder %s32, %s33
      %p47 = scmp.eq.s32.totalorder %s25, 1
      %p48 = por %p46, %p47
      %p50 = scmp.ne.s32.totalorder %s33, %s49
      %p51 = scmp.eq.s32.totalorder %s25, 0
      %p52 = por %p50, %p51
      %s54 = sadd.s32 %s53, 1
      %p57 = scmp.eq.s32.totalorder %s19, 1
      %p58 = scmp.ne.s32.totalorder %s53, %s55
      %p59 = scmp.eq.s32.totalorder %s19, 0
      %p60 = por %p58, %p59
      %p61 = scmp.ne.s32.totalorder %s53, %s55
      %p62 = scmp.eq.s32.totalorder %s24, 1
      %p63 = por %p61, %p62
      %p64 = scmp.ne.s32.totalorder %s55, %s56
      %p65 = scmp.eq.s32.totalorder %s24, 0
      %p66 = por %p64, %p65
      %p67 = scmp.ne.s32.totalorder %s55, %s56
      %p68 = scmp.eq.s32.totalorder %s25, 1
      %p69 = por %p67, %p68
      %p71 = scmp.ne.s32.totalorder %s56, %s70
      %p72 = scmp.eq.s32.totalorder %s25, 0
      %p73 = por %p71, %p72
      %s75 = sadd.s32 %s74, 1
      %p78 = scmp.eq.s32.totalorder %s19, 1
      %p79 = scmp.ne.s32.totalorder %s74, %s76
      %p80 = scmp.eq.s32.totalorder %s19, 0
      %p81 = por %p79, %p80
      %p82 = scmp.ne.s32.totalorder %s74, %s76
      %p83 = scmp.eq.s32.totalorder %s24, 1
      %p84 = por %p82, %p83
      %p85 = scmp.ne.s32.totalorder %s76, %s77
      %p86 = scmp.eq.s32.totalorder %s24, 0
      %p87 = por %p85, %p86
      %p88 = scmp.ne.s32.totalorder %s76, %s77
      %p89 = scmp.eq.s32.totalorder %s25, 1
      %p90 = por %p88, %p89
      %p92 = scmp.ne.s32.totalorder %s77, %s91
      %p93 = scmp.eq.s32.totalorder %s25, 0
      %p94 = por %p92, %p93
      %s96 = sadd.s32 %s95, 1
      %p99 = scmp.eq.s32.totalorder %s19, 1
      %p100 = scmp.ne.s32.totalorder %s95, %s97
      %p101 = scmp.eq.s32.totalorder %s19, 0
      %p102 = por %p100, %p101
      %p103 = scmp.ne.s32.totalorder %s95, %s97
      %p104 = scmp.eq.s32.totalorder %s24, 1
      %p105 = por %p103, %p104
      %p106 = scmp.ne.s32.totalorder %s97, %s98
      %p107 = scmp.eq.s32.totalorder %s24, 0
      %p108 = por %p106, %p107
      %p109 = scmp.ne.s32.totalorder %s97, %s98
      %p110 = scmp.eq.s32.totalorder %s25, 1
      %p111 = por %p109, %p110
      %p113 = scmp.ne.s32.totalorder %s98, %s112
      %p114 = scmp.eq.s32.totalorder %s25, 0
      %p115 = por %p113, %p114
      %s117 = sadd.s32 %s116, 1
      %p120 = scmp.eq.s32.totalorder %s19, 1
      %p121 = scmp.ne.s32.totalorder %s116, %s118
      %p122 = scmp.eq.s32.totalorder %s19, 0
      %p123 = por %p121, %p122
      %p124 = scmp.ne.s32.totalorder %s116, %s118
      %p125 = scmp.eq.s32.totalorder %s24, 1
      %p126 = por %p124, %p125
      %p127 = scmp.ne.s32.totalorder %s118, %s119
      %p128 = scmp.eq.s32.totalorder %s24, 0
      %p129 = por %p127, %p128
      %p130 = scmp.ne.s32.totalorder %s118, %s119
      %p131 = scmp.eq.s32.totalorder %s25, 1
      %p132 = por %p130, %p131
      %p134 = scmp.ne.s32.totalorder %s119, %s133
      %p135 = scmp.eq.s32.totalorder %s25, 0
      %p136 = por %p134, %p135
      %s138 = sadd.s32 %s137, 1
      %p141 = scmp.eq.s32.totalorder %s19, 1
      %p142 = scmp.ne.s32.totalorder %s137, %s139
      %p143 = scmp.eq.s32.totalorder %s19, 0
      %p144 = por %p142, %p143
      %p145 = scmp.ne.s32.totalorder %s137, %s139
      %p146 = scmp.eq.s32.totalorder %s24, 1
      %p147 = por %p145, %p146
      %p148 = scmp.ne.s32.totalorder %s139, %s140
      %p149 = scmp.eq.s32.totalorder %s24, 0
      %p150 = por %p148, %p149
      %p151 = scmp.ne.s32.totalorder %s139, %s140
      %p152 = scmp.eq.s32.totalorder %s25, 1
      %p153 = por %p151, %p152
      %p155 = scmp.ne.s32.totalorder %s140, %s154
      %p156 = scmp.eq.s32.totalorder %s25, 0
      %p157 = por %p155, %p156
      %s159 = sadd.s32 %s158, 1
      %p162 = scmp.eq.s32.totalorder %s19, 1
      %p163 = scmp.ne.s32.totalorder %s158, %s160
      %p164 = scmp.eq.s32.totalorder %s19, 0
      %p165 = por %p163, %p164
      %p166 = scmp.ne.s32.totalorder %s158, %s160
      %p167 = scmp.eq.s32.totalorder %s24, 1
      %p168 = por %p166, %p167
      %p169 = scmp.ne.s32.totalorder %s160, %s161
      %p170 = scmp.eq.s32.totalorder %s24, 0
      %p171 = por %p169, %p170
      %p172 = scmp.ne.s32.totalorder %s160, %s161
      %p173 = scmp.eq.s32.totalorder %s25, 1
      %p174 = por %p172, %p173
      %p176 = scmp.ne.s32.totalorder %s161, %s175
      %p177 = scmp.eq.s32.totalorder %s25, 0
      %p178 = por %p176, %p177
      %s179 = ssub.s32 %s19, %s26
      %p180 = scmp.eq.s32.totalorder %s179, 0
      %s182 = sadd.s32 %s181, 1
      %s183 = scalar_select %p180, %s181, %s182
      %p186 = pneg %p180
      %p187 = scmp.eq.s32.totalorder %s19, 1
      %p188 = por %p186, %p187
      %p189 = scmp.ne.s32.totalorder %s181, %s184
      %p190 = scmp.eq.s32.totalorder %s19, 0
      %p191 = por %p189, %p190
      %p192 = scmp.ne.s32.totalorder %s181, %s184
      %p193 = scmp.eq.s32.totalorder %s24, 1
      %p194 = por %p192, %p193
      %p195 = scmp.ne.s32.totalorder %s184, %s185
      %p196 = scmp.eq.s32.totalorder %s24, 0
      %p197 = por %p195, %p196
      %p198 = scmp.ne.s32.totalorder %s184, %s185
      %p199 = scmp.eq.s32.totalorder %s25, 1
      %p200 = por %p198, %p199
      %p202 = scmp.ne.s32.totalorder %s185, %s201
      %p203 = scmp.eq.s32.totalorder %s25, 0
      %p204 = por %p202, %p203
      %p205 = scmp.le.s32.totalorder 1, %s19
      %p206 = scmp.lt.s32.totalorder %s19, 3
      %p207 = pnand %p205, %p206
      %p208 = pneg %p207
      // Predicated region
      $region9: #{tpu_custom_call.1} parent=5 // pred_check
        _
      $region10: #{tpu_custom_call.1} parent=5 // pred_check_branch
        %210 = sbr.rel (%p207) target = $region12
      $region11: #{tpu_custom_call.1} parent=5 // pred_region
        %s211 = ssub.s32 %s19, 1
        // Predicated region
        $region13: #{tpu_custom_call.1} parent=11 // pred_check
          %p212 = pneg %p66
        $region14: #{tpu_custom_call.1} parent=11 // pred_check_branch
          %214 = sbr.rel (%p212) target = $region16
        $region15: #{tpu_custom_call.1} parent=11 // pred_region
          _
        $region16: #{tpu_custom_call.1} parent=11 // pred_fallthru
          _
        // Predicated region
        $region17: #{tpu_custom_call.1} parent=11 // pred_check
          %p215 = pneg %p87
        $region18: #{tpu_custom_call.1} parent=11 // pred_check_branch
          %217 = sbr.rel (%p215) target = $region20
        $region19: #{tpu_custom_call.1} parent=11 // pred_region
          _
        $region20: #{tpu_custom_call.1} parent=11 // pred_fallthru
          _
        // Predicated region
        $region21: #{tpu_custom_call.1} parent=11 // pred_check
          %p218 = pneg %p108
        $region22: #{tpu_custom_call.1} parent=11 // pred_check_branch
          %220 = sbr.rel (%p218) target = $region24
        $region23: #{tpu_custom_call.1} parent=11 // pred_region
          _
        $region24: #{tpu_custom_call.1} parent=11 // pred_fallthru
          _
        // Predicated region
        $region25: #{tpu_custom_call.1} parent=11 // pred_check
          %p221 = pneg %p129
        $region26: #{tpu_custom_call.1} parent=11 // pred_check_branch
          %223 = sbr.rel (%p221) target = $region28
        $region27: #{tpu_custom_call.1} parent=11 // pred_region
          _
        $region28: #{tpu_custom_call.1} parent=11 // pred_fallthru
          _
        // Predicated region
        $region29: #{tpu_custom_call.1} parent=11 // pred_check
          %p224 = pneg %p150
        $region30: #{tpu_custom_call.1} parent=11 // pred_check_branch
          %226 = sbr.rel (%p224) target = $region32
        $region31: #{tpu_custom_call.1} parent=11 // pred_region
          _
        $region32: #{tpu_custom_call.1} parent=11 // pred_fallthru
          _
        // Predicated region
        $region33: #{tpu_custom_call.1} parent=11 // pred_check
          %p227 = pneg %p171
        $region34: #{tpu_custom_call.1} parent=11 // pred_check_branch
          %229 = sbr.rel (%p227) target = $region36
        $region35: #{tpu_custom_call.1} parent=11 // pred_region
          _
        $region36: #{tpu_custom_call.1} parent=11 // pred_fallthru
          _
      $region12: #{tpu_custom_call.1} parent=5 // pred_fallthru
        _
      %p230 = scmp.lt.s32.totalorder %s19, 2
      // Predicated region
      $region37: #{tpu_custom_call.1} parent=5 // pred_check
        %p231 = pneg %p230
      $region38: #{tpu_custom_call.1} parent=5 // pred_check_branch
        %233 = sbr.rel (%p231) target = $region40
      $region39: #{tpu_custom_call.1} parent=5 // pred_region
        // Predicated region
        $region41: #{tpu_custom_call.1} parent=39 // pred_check
          %p234 = pneg %p39
        $region42: #{tpu_custom_call.1} parent=39 // pred_check_branch
          %236 = sbr.rel (%p234) target = $region44
        $region43: #{tpu_custom_call.1} parent=39 // pred_region
          %p237 = scmp.lt.s32.totalorder %s19, 1
          %s238 = scalar_select %p237, %s19, 1
          %s239 = smul.addr %s238, 2
          %s240 = smul.addr %s239, 4
          %s241 = scalar_lea.vmem %s0, %s240
        $region44: #{tpu_custom_call.1} parent=39 // pred_fallthru
          _
      $region40: #{tpu_custom_call.1} parent=5 // pred_fallthru
        _
      %p242 = scmp.le.s32.totalorder 1, %s19
      %p243 = scmp.lt.s32.totalorder %s19, 3
      %p244 = pnand %p242, %p243
      %p245 = pneg %p244
      // Predicated region
      $region45: #{tpu_custom_call.1} parent=5 // pred_check
        _
      $region46: #{tpu_custom_call.1} parent=5 // pred_check_branch
        %247 = sbr.rel (%p244) target = $region48
      $region47: #{tpu_custom_call.1} parent=5 // pred_region
        %s248 = ssub.s32 %s19, 1
        %p249 = scmp.lt.s32.totalorder %s24, 1
        %s250 = scalar_select %p249, %s24, 1
        %s251 = smul.addr %s250, 2
        %s252 = smul.addr %s251, 4
        %s253 = scalar_lea.vmem %s0, %s252
        %p254 = pneg %p45
        %p255 = pneg %p42
        %p256 = pneg %p66
        %p257 = pneg %p63
        %p258 = pneg %p87
        %p259 = pneg %p84
        %p260 = pneg %p108
        %p261 = pneg %p105
        %p262 = pneg %p129
        %p263 = pneg %p126
        %p264 = pneg %p150
        %p265 = pneg %p147
        %p266 = pneg %p171
        %p267 = pneg %p168
        %p268 = pneg %p197
        %p269 = pneg %p194
        %s270 = sand.u32 %s184, 1
        %s271 = scalar_lea.sflag [#allocation5], %s270
        %s272 = sand.u32 %s184, 1
        %s273 = smul.addr %s272, 8
        %s274 = scalar_lea.vmem [#allocation4], %s273
        %p275 = scmp.lt.s32.totalorder %s24, 1
        %s276 = scalar_select %p275, %s24, 1
        %s277 = smul.addr %s276, 2
        %s278 = smul.addr %s277, 4
        %s279 = scalar_lea.vmem %s0, %s278
        %v280 = vld [vmem:[%s279] sm:$0xff]
        %v282 = vcombine.high %v280, %v280
        %vm284 = vcmask 1043456
        %v285 = vsel %vm284, %v280, 0.0
        %v286 = vsel %vm284, %v282, 0.0
        %v287 = vadd.f32 %v285, %v286
        %288 = vadd.xlane.f32.xlu0 %v287
        %v289 = vpop.xlane.xlu0 %288
        %v290 = vmul.f32 %v289, 0.00390625
        %v291 = vld [vmem:[%s1] sm:$0xf]
        %v292 = vmul.f32 %v290, %v291
        %vm293 = vcmask 3072
        %v294 = vsel %vm293, %v292, 0.0
        %v295 = vrot.slane %v294, 4
        %v296 = vadd.f32 %v294, %v295
        %v297 = vrot.slane %v296, 2
        %v298 = vadd.f32 %v296, %v297
        %v299 = vrot.slane %v298, 1
        %v300 = vadd.f32 %v298, %v299
        %v301 = vld [vmem:[#allocation2] sm:$0x1]
        %v302 = vadd.f32 %v300, %v301
        %v303 = vmax.f32 %v302, 0.0
        %v304 = vld [vmem:[%s3] sm:$0xf]
        %v305 = vlaneseq
        %v306 = vshrl.u32 %v305, 7
        %v307 = vsub.s32 0, %v306
        %v308 = vrot.slane %v303, %v307
        %v309 = vmul.f32 %v304, %v308
        %v310 = vadd.f32 %v309, 0.0
        %v311 = vld [vmem:[%s4] sm:$0xf]
        %v312 = vadd.f32 %v310, %v311
        %v313 = vsub.f32 0.0, %v312
        %v314 = vmul.f32 %v313, 1.442695
        %v315 = vpow.pop %v314
        %v316 = vadd.f32 %v315, 1.0
        %v317 = vrcp.pop %v316
        %v318 = vmul.f32 1.0, %v317
        %v319 = vld [vmem:[%s5] sm:$0xf]
        %321 = vset.pattern.permute.xlu0 0
        %322 = vperm.xlu0 %321, %v319
        %v323 = vpop.permute.xlu0 %322
        %v325 = vmul.f32 %v323, %v280
        %v326 = vmul.f32 %v323, %v282
        %v327 = vsel %vm284, %v325, 0.0
        %v328 = vrot.slane %v327, 4
        %v329 = vadd.f32 %v327, %v328
        %v330 = vrot.slane %v329, 2
        %v331 = vadd.f32 %v329, %v330
        %v332 = vrot.slane %v331, 1
        %v333 = vadd.f32 %v331, %v332
        %v334 = vsel %vm284, %v326, 0.0
        %v335 = vrot.slane %v334, 4
        %v336 = vadd.f32 %v334, %v335
        %v337 = vrot.slane %v336, 2
        %v338 = vadd.f32 %v336, %v337
        %v339 = vrot.slane %v338, 1
        %v340 = vadd.f32 %v338, %v339
        %s341 = sld [smem:[#allocation3]]
        %v342 = vstv %s341
        %v343 = vadd.f32 %v333, %v342
        %v344 = vadd.f32 %v340, %v342
        %v345 = vsub.f32 0.0, %v343
        %v346 = vsub.f32 0.0, %v344
        %v347 = vmul.f32 %v345, 1.442695
        %v348 = vpow.pop %v347
        %v349 = vmul.f32 %v346, 1.442695
        %v350 = vpow.pop %v349
        %v351 = vadd.f32 %v348, 1.0
        %v352 = vadd.f32 %v350, 1.0
        %v353 = vrcp.pop %v351
        %v354 = vmul.f32 1.0, %v353
        %v355 = vrcp.pop %v352
        %v356 = vmul.f32 1.0, %v355
        %358 = vset.pattern.permute.xlu0 0
        %359 = vperm.xlu0 %358, %v318
        %v360 = vpop.permute.xlu0 %359
        %v362 = vadd.f32 %v360, %v354
        %v363 = vadd.f32 %v360, %v356
        %v366 = vcombine.low %v362, %v363
        %v368 = vmul.f32 %v280, %v366
        %369 = vst [vmem:[%s274] sm:$0xff] %v368
        %s370 = sand.u32 %s184, 1
        %s371 = scalar_lea.sflag [#allocation5], %s370
        %s372 = sand.u32 %s184, 1
        %s373 = smul.addr %s372, 8
        %s374 = scalar_lea.vmem [#allocation4], %s373
        // Predicated region
        $region49: #{tpu_custom_call.1} parent=47 // pred_check
          %p375 = pneg %p194
        $region50: #{tpu_custom_call.1} parent=47 // pred_check_branch
          %377 = sbr.rel (%p375) target = $region52
        $region51: #{tpu_custom_call.1} parent=47 // pred_region
          %s379 = ssub.s32 128, 128
          %380 = vsyncadd %s371, %s379
          %s381 = smul.addr %s24, 2
          %s382 = smul.addr %s381, 64
          %s383 = scalar_lea.hbm %s7, %s382
          %s385 = sshll.u32 %s374, 4
          %s386 = int_to_ptr.vmem [resolvable:$true] %s385
          %388 = dma.vmem_to_hbm [thread:$0]  %s386, 128, %s383, %s371
        $region52: #{tpu_custom_call.1} parent=47 // pred_fallthru
          _
      $region48: #{tpu_custom_call.1} parent=5 // pred_fallthru
        _
      %p389 = scmp.le.s32.totalorder 2, %s19
      // Predicated region
      $region53: #{tpu_custom_call.1} parent=5 // pred_check
        %p390 = pneg %p389
      $region54: #{tpu_custom_call.1} parent=5 // pred_check_branch
        %392 = sbr.rel (%p390) target = $region56
      $region55: #{tpu_custom_call.1} parent=5 // pred_region
        %s393 = ssub.s32 %s19, 2
        // Predicated region
        $region57: #{tpu_custom_call.1} parent=55 // pred_check
          %p394 = pneg %p200
        $region58: #{tpu_custom_call.1} parent=55 // pred_check_branch
          %396 = sbr.rel (%p394) target = $region60
        $region59: #{tpu_custom_call.1} parent=55 // pred_region
          %s397 = sand.u32 %s185, 1
          %s398 = scalar_lea.sflag [#allocation5], %s397
          %s399 = sand.u32 %s185, 1
          %s400 = smul.addr %s399, 8
          %s401 = scalar_lea.vmem [#allocation4], %s400
          %402 = dma.done %s398, 128
        $region60: #{tpu_custom_call.1} parent=55 // pred_fallthru
          _
      $region56: #{tpu_custom_call.1} parent=5 // pred_fallthru
        _
    $region6: #{tpu_custom_call.1} parent=1 // loop_footer
      %s23 = sadd.s32 1, %s19
    $region7: #{tpu_custom_call.1} parent=1 // loop_footer_branch
      %18 = sbr.rel target = $region3
    $region8: #{tpu_custom_call.1} parent=1 // loop_exit
      _
    %403 = vsyncpa [#allocation5], 1
    %s404 = scalar_lea.sflag [#allocation5], 1
    %405 = vsyncpa %s404, 1

</llo_original>
